<compile_context>
chip_gen: v7x
topology: tpu7x:2x2x1
jax: 0.10.0
libtpu: 0.0.40
codegen_flags: <defaults>
</compile_context>

<pallas_src>
import jax
import jax.numpy as jnp
import numpy as np
from jax.experimental import pallas as pl
from jax.experimental.pallas import tpu as pltpu


def _nonlocal_kernel(x_ref, wproj_ref, bproj_ref, ww_ref, bias_ref, o_ref):
    ic = ww_ref.shape[1]
    n = x_ref.shape[2]
    # Key-axis chunk for the fused relu + contraction (64-128 sublanes keeps the
    # affinity tile resident in vregs instead of round-tripping through VMEM).
    chunk = 128 if n % 128 == 0 else n

    # Hoist param loads out of the (static) batch loop.
    wproj = wproj_ref[...]          # (IC+2, C)  -- 1/N already folded into rows [:IC]
    bproj = bproj_ref[...]          # (IC+2, 1)
    ww = ww_ref[...]                # (C, IC)    -- BN scale already folded in
    bias = bias_ref[...]            # (C, 1)     -- bn_scale*bw + bn_shift

    for bb in range(x_ref.shape[0]):            # static: 1 (per-batch grid) or B (collapsed)
        x = x_ref[bb]                           # (C, N) f32, N lane-dense

        # Fused g / theta / phi / concat_project projections: one skinny MXU matmul.
        proj = jnp.dot(wproj, x, preferred_element_type=jnp.float32) + bproj
        g_x = proj[:ic]                         # (IC, N), already scaled by 1/N
        a_row = proj[ic:ic + 1]                 # (1, N)  theta path (query index)
        p_row = proj[ic + 1:ic + 2]             # (1, N)  phi path   (key index)

        # Hoist the 1x1 W conv (with folded BN scale) ahead of the big contraction:
        # G = Ww_f @ g_x done as IC rank-1 VPU FMAs -> no K=IC MXU matmul afterwards.
        G = ww[:, 0:1] * g_x[0:1]
        for j in range(1, ic):
            G = G + ww[:, j:j + 1] * g_x[j:j + 1]                      # (C, N)

        # Fused affinity build + contraction over key chunks; ft[m, q] = relu(p[m] + a[q])
        # is produced chunk-by-chunk and consumed immediately by the MXU.
        p_col = jnp.transpose(p_row)            # (N, 1): tiny lane -> sublane relayout
        wy = None
        for m0 in range(0, n, chunk):
            ft_c = jnp.maximum(p_col[m0:m0 + chunk] + a_row, 0.0)      # (chunk, N)
            part = jnp.dot(G[:, m0:m0 + chunk], ft_c,
                           preferred_element_type=jnp.float32)         # (C, N)
            wy = part if wy is None else wy + part

        # Folded (BN) bias + residual; lane-dense unmasked store.
        o_ref[bb] = (wy + bias + x).astype(o_ref.dtype)


def nonlocal_block_pallas(x_nchw, params):
    """x_nchw: (B, C, H, W) float32. Returns (B, C, H, W)."""
    B, C, H, W = x_nchw.shape
    N = H * W
    IC = C // 2

    # NCHW -> (B, C, N): a free view (no transpose, no HBM round trip).
    x_bcn = x_nchw.reshape(B, C, N).astype(jnp.float32)

    (Wg, bg, Wth, bth, Wph, bph, wct, wcp, Ww, bw, bn_scale, bn_shift) = params

    # Fold concat_project into theta/phi, merge with g into one weight, and
    # fold the 1/N affinity normalization into the g rows (pure constant folding).
    inv_n = 1.0 / N
    wa = wct @ Wth                                   # (C,)
    wp = wcp @ Wph                                   # (C,)
    ca = jnp.dot(wct, bth)                           # scalar bias for a
    cp = jnp.dot(wcp, bph)                           # scalar bias for p
    Wproj = jnp.concatenate([Wg * inv_n, wa[None, :], wp[None, :]], axis=0)        # (IC+2, C)
    bproj = jnp.concatenate([bg * inv_n, ca[None], cp[None]], axis=0)[:, None]     # (IC+2, 1)

    # Fold BatchNorm (eval) and the W-conv bias into the W weights / a single bias.
    Ww_f = bn_scale[:, None] * Ww                                                  # (C, IC)
    bias_f = (bn_scale * bw + bn_shift)[:, None]                                   # (C, 1)

    # Single-TC chips (v5e/v6e): collapse the batch grid into one invocation
    # (per-step pipeline overhead dominates at this size).  Multi-TC chips (v7x):
    # keep grid=(B,) "parallel" so batches shard across the two TensorCores.
    try:
        multi_tc = "v7" in jax.devices()[0].device_kind.lower()
    except Exception:  # pragma: no cover - defensive; both branches are correct
        multi_tc = False
    bps = 1 if (multi_tc and B > 1) else B           # batches per grid step
    steps = B // bps

    def full(a):
        nd = a.ndim
        return pl.BlockSpec(a.shape, lambda i, _nd=nd: (0,) * _nd)

    per_step = pl.BlockSpec((bps, C, N), lambda i: (i, 0, 0))

    out_bcn = pl.pallas_call(
        _nonlocal_kernel,
        out_shape=jax.ShapeDtypeStruct((B, C, N), jnp.float32),
        grid_spec=pltpu.PrefetchScalarGridSpec(
            num_scalar_prefetch=0,
            grid=(steps,),
            in_specs=[
                per_step,           # x          (bps, C, N)
                full(Wproj),        # Wproj      (IC+2, C)
                full(bproj),        # bproj      (IC+2, 1)
                full(Ww_f),         # Ww (BN-folded)  (C, IC)
                full(bias_f),       # folded output bias (C, 1)
            ],
            out_specs=per_step,
        ),
        compiler_params=pltpu.CompilerParams(
            dimension_semantics=("parallel",)),
    )(x_bcn, Wproj, bproj, Ww_f, bias_f)

    # (B, C, N) -> NCHW is again a free view.
    return out_bcn.reshape(B, C, H, W)


def nonlocal_block_ref(x_nchw, params):
    """Pure-JAX reference mirroring the PyTorch forward."""
    B, C, H, W = x_nchw.shape
    N = H * W
    (Wg, bg, Wth, bth, Wph, bph, wct, wcp, Ww, bw, bn_scale, bn_shift) = params
    x = jnp.transpose(x_nchw.reshape(B, C, N), (0, 2, 1))          # (B, N, C)
    g_x = jnp.einsum('bnc,oc->bno', x, Wg) + bg                    # (B, N, IC)
    th = jnp.einsum('bnc,oc->bno', x, Wth) + bth
    ph = jnp.einsum('bnc,oc->bno', x, Wph) + bph
    a = jnp.einsum('bno,o->bn', th, wct)[:, :, None]               # (B, N, 1)
    p = jnp.einsum('bno,o->bn', ph, wcp)[:, None, :]               # (B, 1, N)
    f = jnp.maximum(a + p, 0.0) / N                                # (B, N, N)
    y = jnp.einsum('bnm,bmo->bno', f, g_x)                         # (B, N, IC)
    wy = jnp.einsum('bno,co->bnc', y, Ww) + bw                     # (B, N, C)
    z = wy * bn_scale + bn_shift + x
    return jnp.transpose(z, (0, 2, 1)).reshape(B, C, H, W)


def make_params(key, C):
    IC = C // 2
    ks = jax.random.split(key, 8)
    kaiming = lambda k, shape, fan_in: jax.random.normal(k, shape, jnp.float32) * np.sqrt(2.0 / fan_in)
    Wg  = kaiming(ks[0], (IC, C), C); bg  = jnp.zeros((IC,), jnp.float32)
    Wth = kaiming(ks[1], (IC, C), C); bth = jnp.zeros((IC,), jnp.float32)
    Wph = kaiming(ks[2], (IC, C), C); bph = jnp.zeros((IC,), jnp.float32)
    wcat = kaiming(ks[3], (2 * IC,), 2 * IC)        # concat_project conv weight (1, 2*IC, 1, 1)
    wct, wcp = wcat[:IC], wcat[IC:]
    Ww  = kaiming(ks[4], (C, IC), IC); bw = jnp.zeros((C,), jnp.float32)
    # BatchNorm (eval): scale = gamma / sqrt(var+eps), shift = beta - mean*scale.
    eps = 1e-5
    gamma = 1.0 + 0.1 * jax.random.normal(ks[5], (C,), jnp.float32)
    beta  = 0.1 * jax.random.normal(ks[6], (C,), jnp.float32)
    rmean = 0.05 * jax.random.normal(ks[7], (C,), jnp.float32)
    rvar  = jnp.ones((C,), jnp.float32)
    bn_scale = gamma / jnp.sqrt(rvar + eps)
    bn_shift = beta - rmean * bn_scale
    return (Wg, bg, Wth, bth, Wph, bph, wct, wcp, Ww, bw, bn_scale, bn_shift)


if __name__ == "__main__":
    key = jax.random.PRNGKey(0)
    kx, kp = jax.random.split(key)
    B, C, H, W = 2, 4, 16, 16            # in_channels=4 -> inter_channels=2, N = 256
    x = jax.random.normal(kx, (B, C, H, W), jnp.float32)
    params = make_params(kp, C)

    out = nonlocal_block_pallas(x, params)
    out = jax.block_until_ready(out)

    ref = jax.block_until_ready(nonlocal_block_ref(x, params))
    np.testing.assert_allclose(np.asarray(out), np.asarray(ref), rtol=1e-4, atol=1e-4)

    print("KERNEL_OK")
</pallas_src>

<mosaic_0001>
module attributes {stable_mosaic.version = 11 : i64} {
  func.func @_nonlocal_kernel(%arg0: i32, %arg1: memref<2x4x256xf32, #tpu.memory_space<vmem>>, %arg2: memref<4x4xf32, #tpu.memory_space<vmem>>, %arg3: memref<4x1xf32, #tpu.memory_space<vmem>>, %arg4: memref<4x2xf32, #tpu.memory_space<vmem>>, %arg5: memref<4x1xf32, #tpu.memory_space<vmem>>, %arg6: memref<2x4x256xf32, #tpu.memory_space<vmem>>) attributes {dimension_semantics = [#tpu.dimension_semantics<parallel>], iteration_bounds = array<i64: 1>, scalar_prefetch = 0 : i64, scratch_operands = 0 : i64, tpu.core_type = #tpu.core_type<tc>, window_params = [{transform_indices = @transform_0, window_bounds = array<i64: 2, 4, 256>}, {pipeline_mode = #tpu.pipeline_mode<synchronous>, transform_indices = @transform_1, window_bounds = array<i64: 4, 4>}, {pipeline_mode = #tpu.pipeline_mode<synchronous>, transform_indices = @transform_2, window_bounds = array<i64: 4, 1>}, {pipeline_mode = #tpu.pipeline_mode<synchronous>, transform_indices = @transform_3, window_bounds = array<i64: 4, 2>}, {pipeline_mode = #tpu.pipeline_mode<synchronous>, transform_indices = @transform_4, window_bounds = array<i64: 4, 1>}, {transform_indices = @transform_5, window_bounds = array<i64: 2, 4, 256>}]} {
    %c0 = arith.constant 0 : index
    %c0_0 = arith.constant 0 : index
    %0 = vector.load %arg2[%c0, %c0_0] : memref<4x4xf32, #tpu.memory_space<vmem>>, vector<4x4xf32>
    %c0_1 = arith.constant 0 : index
    %c0_2 = arith.constant 0 : index
    %1 = vector.load %arg3[%c0_1, %c0_2] : memref<4x1xf32, #tpu.memory_space<vmem>>, vector<4x1xf32>
    %c0_3 = arith.constant 0 : index
    %c0_4 = arith.constant 0 : index
    %2 = vector.load %arg4[%c0_3, %c0_4] : memref<4x2xf32, #tpu.memory_space<vmem>>, vector<4x2xf32>
    %c0_5 = arith.constant 0 : index
    %c0_6 = arith.constant 0 : index
    %3 = vector.load %arg5[%c0_5, %c0_6] : memref<4x1xf32, #tpu.memory_space<vmem>>, vector<4x1xf32>
    %c0_7 = arith.constant 0 : index
    %c0_8 = arith.constant 0 : index
    %c0_9 = arith.constant 0 : index
    %4 = vector.load %arg1[%c0_7, %c0_8, %c0_9] : memref<2x4x256xf32, #tpu.memory_space<vmem>>, vector<1x4x256xf32>
    %5 = vector.shape_cast %4 : vector<1x4x256xf32> to vector<4x256xf32>
    %cst = arith.constant dense<0.000000e+00> : vector<4x256xf32>
    %6 = tpu.matmul %0, %5, %cst {dimension_numbers = #tpu.dot_dimension_numbers<[1], [0], [0], [1], [0, 0, 1, 1], [], []>} : vector<4x4xf32>, vector<4x256xf32>, vector<4x256xf32> -> vector<4x256xf32>
    %7 = vector.broadcast %1 : vector<4x1xf32> to vector<4x256xf32>
    %8 = arith.addf %6, %7 : vector<4x256xf32>
    %9 = vector.extract_strided_slice %8 {offsets = [0, 0], sizes = [2, 256], strides = [1, 1]} : vector<4x256xf32> to vector<2x256xf32>
    %10 = vector.extract_strided_slice %8 {offsets = [2, 0], sizes = [1, 256], strides = [1, 1]} : vector<4x256xf32> to vector<1x256xf32>
    %11 = vector.extract_strided_slice %8 {offsets = [3, 0], sizes = [1, 256], strides = [1, 1]} : vector<4x256xf32> to vector<1x256xf32>
    %12 = vector.extract_strided_slice %2 {offsets = [0, 0], sizes = [4, 1], strides = [1, 1]} : vector<4x2xf32> to vector<4x1xf32>
    %13 = vector.extract_strided_slice %9 {offsets = [0, 0], sizes = [1, 256], strides = [1, 1]} : vector<2x256xf32> to vector<1x256xf32>
    %14 = vector.broadcast %12 : vector<4x1xf32> to vector<4x256xf32>
    %15 = vector.broadcast %13 : vector<1x256xf32> to vector<4x256xf32>
    %16 = arith.mulf %14, %15 : vector<4x256xf32>
    %17 = vector.extract_strided_slice %2 {offsets = [0, 1], sizes = [4, 1], strides = [1, 1]} : vector<4x2xf32> to vector<4x1xf32>
    %18 = vector.extract_strided_slice %9 {offsets = [1, 0], sizes = [1, 256], strides = [1, 1]} : vector<2x256xf32> to vector<1x256xf32>
    %19 = vector.broadcast %17 : vector<4x1xf32> to vector<4x256xf32>
    %20 = vector.broadcast %18 : vector<1x256xf32> to vector<4x256xf32>
    %21 = arith.mulf %19, %20 : vector<4x256xf32>
    %22 = arith.addf %16, %21 : vector<4x256xf32>
    %23 = tpu.transpose %11, [1, 0] : vector<1x256xf32> -> vector<256x1xf32>
    %24 = vector.extract_strided_slice %23 {offsets = [0, 0], sizes = [128, 1], strides = [1, 1]} : vector<256x1xf32> to vector<128x1xf32>
    %25 = vector.broadcast %24 : vector<128x1xf32> to vector<128x256xf32>
    %26 = vector.broadcast %10 : vector<1x256xf32> to vector<128x256xf32>
    %27 = arith.addf %25, %26 : vector<128x256xf32>
    %cst_10 = arith.constant 0.000000e+00 : f32
    %28 = vector.broadcast %cst_10 : f32 to vector<128x256xf32>
    %29 = arith.maximumf %27, %28 : vector<128x256xf32>
    %30 = vector.extract_strided_slice %22 {offsets = [0, 0], sizes = [4, 128], strides = [1, 1]} : vector<4x256xf32> to vector<4x128xf32>
    %cst_11 = arith.constant dense<0.000000e+00> : vector<4x256xf32>
    %31 = tpu.matmul %30, %29, %cst_11 {dimension_numbers = #tpu.dot_dimension_numbers<[1], [0], [0], [1], [0, 0, 1, 1], [], []>} : vector<4x128xf32>, vector<128x256xf32>, vector<4x256xf32> -> vector<4x256xf32>
    %32 = vector.extract_strided_slice %23 {offsets = [128, 0], sizes = [128, 1], strides = [1, 1]} : vector<256x1xf32> to vector<128x1xf32>
    %33 = vector.broadcast %32 : vector<128x1xf32> to vector<128x256xf32>
    %34 = vector.broadcast %10 : vector<1x256xf32> to vector<128x256xf32>
    %35 = arith.addf %33, %34 : vector<128x256xf32>
    %cst_12 = arith.constant 0.000000e+00 : f32
    %36 = vector.broadcast %cst_12 : f32 to vector<128x256xf32>
    %37 = arith.maximumf %35, %36 : vector<128x256xf32>
    %38 = vector.extract_strided_slice %22 {offsets = [0, 128], sizes = [4, 128], strides = [1, 1]} : vector<4x256xf32> to vector<4x128xf32>
    %cst_13 = arith.constant dense<0.000000e+00> : vector<4x256xf32>
    %39 = tpu.matmul %38, %37, %cst_13 {dimension_numbers = #tpu.dot_dimension_numbers<[1], [0], [0], [1], [0, 0, 1, 1], [], []>} : vector<4x128xf32>, vector<128x256xf32>, vector<4x256xf32> -> vector<4x256xf32>
    %40 = arith.addf %31, %39 : vector<4x256xf32>
    %41 = vector.broadcast %3 : vector<4x1xf32> to vector<4x256xf32>
    %42 = arith.addf %40, %41 : vector<4x256xf32>
    %43 = arith.addf %42, %5 : vector<4x256xf32>
    %c0_14 = arith.constant 0 : index
    %c0_15 = arith.constant 0 : index
    %c0_16 = arith.constant 0 : index
    %44 = vector.load %arg6[%c0_14, %c0_15, %c0_16] : memref<2x4x256xf32, #tpu.memory_space<vmem>>, vector<1x4x256xf32>
    %45 = vector.shape_cast %44 : vector<1x4x256xf32> to vector<4x256xf32>
    %46 = vector.shape_cast %43 : vector<4x256xf32> to vector<1x4x256xf32>
    tpu.vector_store %arg6[%c0_14, %c0_15, %c0_16], %46 {strides = array<i32>} : memref<2x4x256xf32, #tpu.memory_space<vmem>>, vector<1x4x256xf32>,
    %c1 = arith.constant 1 : index
    %c0_17 = arith.constant 0 : index
    %c0_18 = arith.constant 0 : index
    %47 = vector.load %arg1[%c1, %c0_17, %c0_18] : memref<2x4x256xf32, #tpu.memory_space<vmem>>, vector<1x4x256xf32>
    %48 = vector.shape_cast %47 : vector<1x4x256xf32> to vector<4x256xf32>
    %cst_19 = arith.constant dense<0.000000e+00> : vector<4x256xf32>
    %49 = tpu.matmul %0, %48, %cst_19 {dimension_numbers = #tpu.dot_dimension_numbers<[1], [0], [0], [1], [0, 0, 1, 1], [], []>} : vector<4x4xf32>, vector<4x256xf32>, vector<4x256xf32> -> vector<4x256xf32>
    %50 = vector.broadcast %1 : vector<4x1xf32> to vector<4x256xf32>
    %51 = arith.addf %49, %50 : vector<4x256xf32>
    %52 = vector.extract_strided_slice %51 {offsets = [0, 0], sizes = [2, 256], strides = [1, 1]} : vector<4x256xf32> to vector<2x256xf32>
    %53 = vector.extract_strided_slice %51 {offsets = [2, 0], sizes = [1, 256], strides = [1, 1]} : vector<4x256xf32> to vector<1x256xf32>
    %54 = vector.extract_strided_slice %51 {offsets = [3, 0], sizes = [1, 256], strides = [1, 1]} : vector<4x256xf32> to vector<1x256xf32>
    %55 = vector.extract_strided_slice %2 {offsets = [0, 0], sizes = [4, 1], strides = [1, 1]} : vector<4x2xf32> to vector<4x1xf32>
    %56 = vector.extract_strided_slice %52 {offsets = [0, 0], sizes = [1, 256], strides = [1, 1]} : vector<2x256xf32> to vector<1x256xf32>
    %57 = vector.broadcast %55 : vector<4x1xf32> to vector<4x256xf32>
    %58 = vector.broadcast %56 : vector<1x256xf32> to vector<4x256xf32>
    %59 = arith.mulf %57, %58 : vector<4x256xf32>
    %60 = vector.extract_strided_slice %2 {offsets = [0, 1], sizes = [4, 1], strides = [1, 1]} : vector<4x2xf32> to vector<4x1xf32>
    %61 = vector.extract_strided_slice %52 {offsets = [1, 0], sizes = [1, 256], strides = [1, 1]} : vector<2x256xf32> to vector<1x256xf32>
    %62 = vector.broadcast %60 : vector<4x1xf32> to vector<4x256xf32>
    %63 = vector.broadcast %61 : vector<1x256xf32> to vector<4x256xf32>
    %64 = arith.mulf %62, %63 : vector<4x256xf32>
    %65 = arith.addf %59, %64 : vector<4x256xf32>
    %66 = tpu.transpose %54, [1, 0] : vector<1x256xf32> -> vector<256x1xf32>
    %67 = vector.extract_strided_slice %66 {offsets = [0, 0], sizes = [128, 1], strides = [1, 1]} : vector<256x1xf32> to vector<128x1xf32>
    %68 = vector.broadcast %67 : vector<128x1xf32> to vector<128x256xf32>
    %69 = vector.broadcast %53 : vector<1x256xf32> to vector<128x256xf32>
    %70 = arith.addf %68, %69 : vector<128x256xf32>
    %cst_20 = arith.constant 0.000000e+00 : f32
    %71 = vector.broadcast %cst_20 : f32 to vector<128x256xf32>
    %72 = arith.maximumf %70, %71 : vector<128x256xf32>
    %73 = vector.extract_strided_slice %65 {offsets = [0, 0], sizes = [4, 128], strides = [1, 1]} : vector<4x256xf32> to vector<4x128xf32>
    %cst_21 = arith.constant dense<0.000000e+00> : vector<4x256xf32>
    %74 = tpu.matmul %73, %72, %cst_21 {dimension_numbers = #tpu.dot_dimension_numbers<[1], [0], [0], [1], [0, 0, 1, 1], [], []>} : vector<4x128xf32>, vector<128x256xf32>, vector<4x256xf32> -> vector<4x256xf32>
    %75 = vector.extract_strided_slice %66 {offsets = [128, 0], sizes = [128, 1], strides = [1, 1]} : vector<256x1xf32> to vector<128x1xf32>
    %76 = vector.broadcast %75 : vector<128x1xf32> to vector<128x256xf32>
    %77 = vector.broadcast %53 : vector<1x256xf32> to vector<128x256xf32>
    %78 = arith.addf %76, %77 : vector<128x256xf32>
    %cst_22 = arith.constant 0.000000e+00 : f32
    %79 = vector.broadcast %cst_22 : f32 to vector<128x256xf32>
    %80 = arith.maximumf %78, %79 : vector<128x256xf32>
    %81 = vector.extract_strided_slice %65 {offsets = [0, 128], sizes = [4, 128], strides = [1, 1]} : vector<4x256xf32> to vector<4x128xf32>
    %cst_23 = arith.constant dense<0.000000e+00> : vector<4x256xf32>
    %82 = tpu.matmul %81, %80, %cst_23 {dimension_numbers = #tpu.dot_dimension_numbers<[1], [0], [0], [1], [0, 0, 1, 1], [], []>} : vector<4x128xf32>, vector<128x256xf32>, vector<4x256xf32> -> vector<4x256xf32>
    %83 = arith.addf %74, %82 : vector<4x256xf32>
    %84 = vector.broadcast %3 : vector<4x1xf32> to vector<4x256xf32>
    %85 = arith.addf %83, %84 : vector<4x256xf32>
    %86 = arith.addf %85, %48 : vector<4x256xf32>
    %c1_24 = arith.constant 1 : index
    %c0_25 = arith.constant 0 : index
    %c0_26 = arith.constant 0 : index
    %87 = vector.load %arg6[%c1_24, %c0_25, %c0_26] : memref<2x4x256xf32, #tpu.memory_space<vmem>>, vector<1x4x256xf32>
    %88 = vector.shape_cast %87 : vector<1x4x256xf32> to vector<4x256xf32>
    %89 = vector.shape_cast %86 : vector<4x256xf32> to vector<1x4x256xf32>
    tpu.vector_store %arg6[%c1_24, %c0_25, %c0_26], %89 {strides = array<i32>} : memref<2x4x256xf32, #tpu.memory_space<vmem>>, vector<1x4x256xf32>,
    return
  }
  func.func @transform_0(%arg0: i32) -> (i32, i32, i32) {
    %c0_i32 = arith.constant 0 : i32
    %c0_i32_0 = arith.constant 0 : i32
    %c0_i32_1 = arith.constant 0 : i32
    return %arg0, %c0_i32, %c0_i32_0 : i32, i32, i32
  }
  func.func @transform_1(%arg0: i32) -> (i32, i32) {
    %c0_i32 = arith.constant 0 : i32
    %c0_i32_0 = arith.constant 0 : i32
    %c0_i32_1 = arith.constant 0 : i32
    return %c0_i32, %c0_i32_0 : i32, i32
  }
  func.func @transform_2(%arg0: i32) -> (i32, i32) {
    %c0_i32 = arith.constant 0 : i32
    %c0_i32_0 = arith.constant 0 : i32
    %c0_i32_1 = arith.constant 0 : i32
    return %c0_i32, %c0_i32_0 : i32, i32
  }
  func.func @transform_3(%arg0: i32) -> (i32, i32) {
    %c0_i32 = arith.constant 0 : i32
    %c0_i32_0 = arith.constant 0 : i32
    %c0_i32_1 = arith.constant 0 : i32
    return %c0_i32, %c0_i32_0 : i32, i32
  }
  func.func @transform_4(%arg0: i32) -> (i32, i32) {
    %c0_i32 = arith.constant 0 : i32
    %c0_i32_0 = arith.constant 0 : i32
    %c0_i32_1 = arith.constant 0 : i32
    return %c0_i32, %c0_i32_0 : i32, i32
  }
  func.func @transform_5(%arg0: i32) -> (i32, i32, i32) {
    %c0_i32 = arith.constant 0 : i32
    %c0_i32_0 = arith.constant 0 : i32
    %c0_i32_1 = arith.constant 0 : i32
    return %arg0, %c0_i32, %c0_i32_0 : i32, i32, i32
  }
}

</mosaic_0001>

<llo_original>
// kernel: tpu_custom_call.1
$region0: #{tpu_custom_call.1}
  #allocation0 [shape = 'u32[]', space=smem, size = 0x4, offset = 0x4, fixed_abs, tag = 'smem constant byte address 0x4 - core index']
  #allocation1 [shape = 'u32[144,128]{1,0:T(1,128)}', space=vmem, size = 0x12000, scoped, tag = 'internal scratch']
  %s0 = inlined_call_operand.hbm [shape: f32[2,4,256], index: 0, kind: input, shape index: {}]
  %s1 = inlined_call_operand.vmem [shape: f32[4,4], index: 1, kind: input, shape index: {}]
  %s2 = inlined_call_operand.vmem [shape: f32[4,1], index: 2, kind: input, shape index: {}]
  %s3 = inlined_call_operand.vmem [shape: f32[4,2], index: 3, kind: input, shape index: {}]
  %s4 = inlined_call_operand.vmem [shape: f32[4,1], index: 4, kind: input, shape index: {}]
  %s5 = inlined_call_operand.hbm [shape: f32[2,4,256], index: 5, kind: output, shape index: {}]
  %s6 = sld [smem:[#allocation0]]
  $region34: #{tpu_custom_call.1} parent=0
    _
  %s8 = ssub.s32 1, %s6
  %s9 = scalar_select 0, %s8, %s6
  $region1: #{tpu_custom_call.1} parent=0
    #allocation2 [shape = 'u8[8192]{0}', space=vmem, size = 0x2000, scoped, tag = 'input window, operand 0, single buffered']
    #allocation3 [shape = 's32[1]{0}', space=sflag, size = 0x4, scoped, tag = 'scoped memory for tpu_custom_call.1']
    #allocation4 [shape = 's32[1]{0}', space=sflag, size = 0x4, scoped, tag = 'scoped memory for tpu_custom_call.1']
    #allocation5 [shape = 'u8[8192]{0}', space=vmem, size = 0x2000, scoped, tag = 'output window, operand 0, single buffered']
    %10 = vsyncpa [#allocation3], 0
    %11 = vsyncpa [#allocation4], 0
    // Predicated region
    $region2: #{tpu_custom_call.1} parent=1 // pred_check
      _
    $region3: #{tpu_custom_call.1} parent=1 // pred_check_branch
      %13 = sbr.rel (0) target = $region5
    $region4: #{tpu_custom_call.1} parent=1 // pred_region
      %s15 = ssub.s32 256, 256
      %16 = vsyncadd [#allocation3], %s15
      %s17 = sshll.u32 [#allocation2], 4
      %s18 = int_to_ptr.vmem [resolvable:$true] %s17
      %23 = dma.hbm_to_vmem [thread:$0]  %s0, 256, %s18, [#allocation3], 128, 128, 8
    $region5: #{tpu_custom_call.1} parent=1 // pred_fallthru
      _
    // Predicated region
    $region6: #{tpu_custom_call.1} parent=1 // pred_check
      _
    $region7: #{tpu_custom_call.1} parent=1 // pred_check_branch
      %25 = sbr.rel (0) target = $region9
    $region8: #{tpu_custom_call.1} parent=1 // pred_region
      _
    $region9: #{tpu_custom_call.1} parent=1 // pred_fallthru
      _
    // Predicated region
    $region10: #{tpu_custom_call.1} parent=1 // pred_check
      _
    $region11: #{tpu_custom_call.1} parent=1 // pred_check_branch
      %27 = sbr.rel (0) target = $region13
    $region12: #{tpu_custom_call.1} parent=1 // pred_region
      _
    $region13: #{tpu_custom_call.1} parent=1 // pred_fallthru
      _
    // Predicated region
    $region14: #{tpu_custom_call.1} parent=1 // pred_check
      _
    $region15: #{tpu_custom_call.1} parent=1 // pred_check_branch
      %29 = sbr.rel (0) target = $region17
    $region16: #{tpu_custom_call.1} parent=1 // pred_region
      _
    $region17: #{tpu_custom_call.1} parent=1 // pred_fallthru
      _
    // Predicated region
    $region18: #{tpu_custom_call.1} parent=1 // pred_check
      _
    $region19: #{tpu_custom_call.1} parent=1 // pred_check_branch
      %31 = sbr.rel (0) target = $region21
    $region20: #{tpu_custom_call.1} parent=1 // pred_region
      _
    $region21: #{tpu_custom_call.1} parent=1 // pred_fallthru
      _
    // Predicated region
    $region22: #{tpu_custom_call.1} parent=1 // pred_check
      _
    $region23: #{tpu_custom_call.1} parent=1 // pred_check_branch
      %33 = sbr.rel (0) target = $region25
    $region24: #{tpu_custom_call.1} parent=1 // pred_region
      %34 = dma.done [#allocation3], 256
    $region25: #{tpu_custom_call.1} parent=1 // pred_fallthru
      _
    %v35 = vld [vmem:[%s1] sm:$0xf]
    %v36 = vld [vmem:[%s2] sm:$0xf]
    %v37 = vld [vmem:[%s3] sm:$0xf]
    %v38 = vld [vmem:[%s4] sm:$0xf]
    %v39 = vld [vmem:[#allocation2] sm:$0xff]
    %41 = vset.pattern.permute.xlu0 0
    %42 = vperm.xlu0 %41, %v36
    %v43 = vpop.permute.xlu0 %42
    %v46 = vcombine.high %v39, %v39
    %vm47 = vcmask 31744
    %v49 = vsel %vm47, %v35, 0
    %vm51 = vcmask 1043456
    %v52 = vsel %vm51, %v39, 0
    %v54 = vsel %vm51, %v46, 0
    %56 = vmatprep.subr.mxu0 %v54
    %57 = vmatpush1.msra.mxu0 %v52
    %58 = vmatprep.subr.mxu0 0.0
    %59 = vmatpush1.msra.mxu0 0.0
    %60 = vmatprep.subr.mxu0 0.0
    %61 = vmatpush1.msra.mxu0 0.0
    %62 = vmatprep.subr.mxu0 0.0
    %63 = vmatpush1.msra.mxu0 0.0
    %64 = vmatprep.subr.mxu0 0.0
    %65 = vmatpush1.msra.mxu0 0.0
    %66 = vmatprep.subr.mxu0 0.0
    %67 = vmatpush1.msra.mxu0 0.0
    %68 = vmatprep.subr.mxu0 0.0
    %69 = vmatpush1.msra.mxu0 0.0
    %70 = vmatprep.subr.mxu0 0.0
    %71 = vmatpush1.msra.mxu0 0.0
    %72 = vmatprep.subr.mxu0 0.0
    %73 = vmatpush1.msra.mxu0 0.0
    %74 = vmatprep.subr.mxu0 0.0
    %75 = vmatpush1.msra.mxu0 0.0
    %76 = vmatprep.subr.mxu0 0.0
    %77 = vmatpush1.msra.mxu0 0.0
    %78 = vmatprep.subr.mxu0 0.0
    %79 = vmatpush1.msra.mxu0 0.0
    %80 = vmatprep.subr.mxu0 0.0
    %81 = vmatpush1.msra.mxu0 0.0
    %82 = vmatprep.subr.mxu0 0.0
    %83 = vmatpush1.msra.mxu0 0.0
    %84 = vmatprep.subr.mxu0 0.0
    %85 = vmatpush1.msra.mxu0 0.0
    %86 = vmatprep.subr.mxu0 0.0
    %87 = vmatpush1.msra.mxu0 0.0
    %88 = vmatprep.subr.mxu0 0.0
    %89 = vmatpush1.msra.mxu0 0.0
    %90 = vmatprep.subr.mxu0 0.0
    %91 = vmatpush1.msra.mxu0 0.0
    %92 = vmatprep.subr.mxu0 0.0
    %93 = vmatpush1.msra.mxu0 0.0
    %94 = vmatprep.subr.mxu0 0.0
    %95 = vmatpush1.msra.mxu0 0.0
    %96 = vmatprep.subr.mxu0 0.0
    %97 = vmatpush1.msra.mxu0 0.0
    %98 = vmatprep.subr.mxu0 0.0
    %99 = vmatpush1.msra.mxu0 0.0
    %100 = vmatprep.subr.mxu0 0.0
    %101 = vmatpush1.msra.mxu0 0.0
    %102 = vmatprep.subr.mxu0 0.0
    %103 = vmatpush1.msra.mxu0 0.0
    %104 = vmatprep.subr.mxu0 0.0
    %105 = vmatpush1.msra.mxu0 0.0
    %106 = vmatprep.subr.mxu0 0.0
    %107 = vmatpush1.msra.mxu0 0.0
    %108 = vmatprep.subr.mxu0 0.0
    %109 = vmatpush1.msra.mxu0 0.0
    %110 = vmatprep.subr.mxu0 0.0
    %111 = vmatpush1.msra.mxu0 0.0
    %112 = vmatprep.subr.mxu0 0.0
    %113 = vmatpush1.msra.mxu0 0.0
    %114 = vmatprep.subr.mxu0 0.0
    %115 = vmatpush1.msra.mxu0 0.0
    %116 = vmatprep.subr.mxu0 0.0
    %117 = vmatpush1.msra.mxu0 0.0
    %118 = vmatprep.subr.mxu0 0.0
    %119 = vmatpush1.msra.mxu0 0.0
    %120 = vmatprep.mubr.f32.mxu0 0.0
    %121 = vmatmul.mubr.f32.gmra.mrb[0].mxu0 %v49
    %v122 = vpop.f32.mrb[0].mxu0
    %v123 = vadd.f32 %v43, %v122
    %v124 = vpop.f32.mrb[0].mxu0
    %v125 = vadd.f32 %v43, %v124
    %126 = vdwg.mxu0
    %128 = vset.pattern.permute.xlu0 0
    %129 = vperm.xlu0 %128, %v37
    %v130 = vpop.permute.xlu0 %129
    %v132 = vlaneseq
    %v133 = vshrl.u32 %v132, 7
    %v134 = vsub.s32 0, %v133
    %v135 = vrot.slane %v123, %v134
    %v136 = vlaneseq
    %v137 = vshrl.u32 %v136, 7
    %v138 = vsub.s32 0, %v137
    %v139 = vrot.slane %v125, %v138
    %v140 = vmul.f32 %v130, %v135
    %v141 = vmul.f32 %v130, %v139
    %142 = vset.pattern.permute.xlu0 1
    %143 = vperm.xlu0 %142, %v37
    %v144 = vpop.permute.xlu0 %143
    %v146 = vlaneseq
    %v147 = vshrl.u32 %v146, 7
    %v148 = vsub.s32 1, %v147
    %v149 = vrot.slane %v123, %v148
    %v150 = vlaneseq
    %v151 = vshrl.u32 %v150, 7
    %v152 = vsub.s32 1, %v151
    %v153 = vrot.slane %v125, %v152
    %v154 = vmul.f32 %v144, %v149
    %v155 = vmul.f32 %v144, %v153
    %v156 = vadd.f32 %v140, %v154
    %v157 = vadd.f32 %v141, %v155
    %v160 = vrot.slane %v123, 3
    %v161 = vrot.slane %v125, 3
    %164 = vxpose.xlu0.b32.start [1/16] %v160, 128
    %165 = vxpose.xlu0.b32.cont [2/16] 0.0, 128
    %166 = vxpose.xlu0.b32.cont [3/16] 0.0, 128
    %167 = vxpose.xlu0.b32.cont [4/16] 0.0, 128
    %168 = vxpose.xlu0.b32.cont [5/16] 0.0, 128
    %169 = vxpose.xlu0.b32.cont [6/16] 0.0, 128
    %170 = vxpose.xlu0.b32.cont [7/16] 0.0, 128
    %171 = vxpose.xlu0.b32.cont [8/16] 0.0, 128
    %172 = vxpose.xlu0.b32.cont [9/16] 0.0, 128
    %173 = vxpose.xlu0.b32.cont [10/16] 0.0, 128
    %174 = vxpose.xlu0.b32.cont [11/16] 0.0, 128
    %175 = vxpose.xlu0.b32.cont [12/16] 0.0, 128
    %176 = vxpose.xlu0.b32.cont [13/16] 0.0, 128
    %177 = vxpose.xlu0.b32.cont [14/16] 0.0, 128
    %178 = vxpose.xlu0.b32.cont [15/16] 0.0, 128
    %179 = vxpose.xlu0.b32.end [16/16] 0.0, 128
    %v180 = vpop.trf.xlu0
    %v181 = vpop.trf.xlu0
    %v182 = vpop.trf.xlu0
    %v183 = vpop.trf.xlu0
    %v184 = vpop.trf.xlu0
    %v185 = vpop.trf.xlu0
    %v186 = vpop.trf.xlu0
    %v187 = vpop.trf.xlu0
    %v188 = vpop.trf.xlu0
    %v189 = vpop.trf.xlu0
    %v190 = vpop.trf.xlu0
    %v191 = vpop.trf.xlu0
    %v192 = vpop.trf.xlu0
    %v193 = vpop.trf.xlu0
    %v194 = vpop.trf.xlu0
    %v195 = vpop.trf.xlu0
    %196 = vxpose.xlu0.b32.start [1/16] %v161, 128
    %197 = vxpose.xlu0.b32.cont [2/16] 0.0, 128
    %198 = vxpose.xlu0.b32.cont [3/16] 0.0, 128
    %199 = vxpose.xlu0.b32.cont [4/16] 0.0, 128
    %200 = vxpose.xlu0.b32.cont [5/16] 0.0, 128
    %201 = vxpose.xlu0.b32.cont [6/16] 0.0, 128
    %202 = vxpose.xlu0.b32.cont [7/16] 0.0, 128
    %203 = vxpose.xlu0.b32.cont [8/16] 0.0, 128
    %204 = vxpose.xlu0.b32.cont [9/16] 0.0, 128
    %205 = vxpose.xlu0.b32.cont [10/16] 0.0, 128
    %206 = vxpose.xlu0.b32.cont [11/16] 0.0, 128
    %207 = vxpose.xlu0.b32.cont [12/16] 0.0, 128
    %208 = vxpose.xlu0.b32.cont [13/16] 0.0, 128
    %209 = vxpose.xlu0.b32.cont [14/16] 0.0, 128
    %210 = vxpose.xlu0.b32.cont [15/16] 0.0, 128
    %211 = vxpose.xlu0.b32.end [16/16] 0.0, 128
    %v212 = vpop.trf.xlu0
    %v213 = vpop.trf.xlu0
    %v214 = vpop.trf.xlu0
    %v215 = vpop.trf.xlu0
    %v216 = vpop.trf.xlu0
    %v217 = vpop.trf.xlu0
    %v218 = vpop.trf.xlu0
    %v219 = vpop.trf.xlu0
    %v220 = vpop.trf.xlu0
    %v221 = vpop.trf.xlu0
    %v222 = vpop.trf.xlu0
    %v223 = vpop.trf.xlu0
    %v224 = vpop.trf.xlu0
    %v225 = vpop.trf.xlu0
    %v226 = vpop.trf.xlu0
    %v227 = vpop.trf.xlu0
    %229 = vset.pattern.permute.xlu0 0
    %230 = vperm.xlu0 %229, %v180
    %v231 = vpop.permute.xlu0 %230
    %234 = vset.pattern.permute.xlu0 0
    %235 = vperm.xlu0 %234, %v181
    %v236 = vpop.permute.xlu0 %235
    %239 = vset.pattern.permute.xlu0 0
    %240 = vperm.xlu0 %239, %v182
    %v241 = vpop.permute.xlu0 %240
    %244 = vset.pattern.permute.xlu0 0
    %245 = vperm.xlu0 %244, %v183
    %v246 = vpop.permute.xlu0 %245
    %249 = vset.pattern.permute.xlu0 0
    %250 = vperm.xlu0 %249, %v184
    %v251 = vpop.permute.xlu0 %250
    %254 = vset.pattern.permute.xlu0 0
    %255 = vperm.xlu0 %254, %v185
    %v256 = vpop.permute.xlu0 %255
    %259 = vset.pattern.permute.xlu0 0
    %260 = vperm.xlu0 %259, %v186
    %v261 = vpop.permute.xlu0 %260
    %264 = vset.pattern.permute.xlu0 0
    %265 = vperm.xlu0 %264, %v187
    %v266 = vpop.permute.xlu0 %265
    %269 = vset.pattern.permute.xlu0 0
    %270 = vperm.xlu0 %269, %v188
    %v271 = vpop.permute.xlu0 %270
    %274 = vset.pattern.permute.xlu0 0
    %275 = vperm.xlu0 %274, %v189
    %v276 = vpop.permute.xlu0 %275
    %279 = vset.pattern.permute.xlu0 0
    %280 = vperm.xlu0 %279, %v190
    %v281 = vpop.permute.xlu0 %280
    %284 = vset.pattern.permute.xlu0 0
    %285 = vperm.xlu0 %284, %v191
    %v286 = vpop.permute.xlu0 %285
    %289 = vset.pattern.permute.xlu0 0
    %290 = vperm.xlu0 %289, %v192
    %v291 = vpop.permute.xlu0 %290
    %294 = vset.pattern.permute.xlu0 0
    %295 = vperm.xlu0 %294, %v193
    %v296 = vpop.permute.xlu0 %295
    %299 = vset.pattern.permute.xlu0 0
    %300 = vperm.xlu0 %299, %v194
    %v301 = vpop.permute.xlu0 %300
    %304 = vset.pattern.permute.xlu0 0
    %305 = vperm.xlu0 %304, %v195
    %v306 = vpop.permute.xlu0 %305
    %v308 = vlaneseq
    %v309 = vshrl.u32 %v308, 7
    %v310 = vsub.s32 2, %v309
    %v311 = vrot.slane %v123, %v310
    %v312 = vlaneseq
    %v313 = vshrl.u32 %v312, 7
    %v314 = vsub.s32 2, %v313
    %v315 = vrot.slane %v125, %v314
    %v316 = vadd.f32 %v231, %v311
    %v317 = vadd.f32 %v231, %v315
    %v318 = vadd.f32 %v236, %v311
    %v319 = vadd.f32 %v236, %v315
    %v320 = vadd.f32 %v241, %v311
    %v321 = vadd.f32 %v241, %v315
    %v322 = vadd.f32 %v246, %v311
    %v323 = vadd.f32 %v246, %v315
    %v324 = vadd.f32 %v251, %v311
    %v325 = vadd.f32 %v251, %v315
    %v326 = vadd.f32 %v256, %v311
    %v327 = vadd.f32 %v256, %v315
    %v328 = vadd.f32 %v261, %v311
    %v329 = vadd.f32 %v261, %v315
    %v330 = vadd.f32 %v266, %v311
    %v331 = vadd.f32 %v266, %v315
    %v332 = vadd.f32 %v271, %v311
    %v333 = vadd.f32 %v271, %v315
    %v334 = vadd.f32 %v276, %v311
    %v335 = vadd.f32 %v276, %v315
    %v336 = vadd.f32 %v281, %v311
    %v337 = vadd.f32 %v281, %v315
    %v338 = vadd.f32 %v286, %v311
    %v339 = vadd.f32 %v286, %v315
    %v340 = vadd.f32 %v291, %v311
    %v341 = vadd.f32 %v291, %v315
    %v342 = vadd.f32 %v296, %v311
    %v343 = vadd.f32 %v296, %v315
    %v344 = vadd.f32 %v301, %v311
    %v345 = vadd.f32 %v301, %v315
    %v346 = vadd.f32 %v306, %v311
    %v347 = vadd.f32 %v306, %v315
    %v348 = vmax.f32 %v316, 0.0
    %v349 = vmax.f32 %v317, 0.0
    %v350 = vmax.f32 %v318, 0.0
    %v351 = vmax.f32 %v319, 0.0
    %v352 = vmax.f32 %v320, 0.0
    %v353 = vmax.f32 %v321, 0.0
    %v354 = vmax.f32 %v322, 0.0
    %v355 = vmax.f32 %v323, 0.0
    %v356 = vmax.f32 %v324, 0.0
    %v357 = vmax.f32 %v325, 0.0
    %v358 = vmax.f32 %v326, 0.0
    %v359 = vmax.f32 %v327, 0.0
    %v360 = vmax.f32 %v328, 0.0
    %v361 = vmax.f32 %v329, 0.0
    %v362 = vmax.f32 %v330, 0.0
    %v363 = vmax.f32 %v331, 0.0
    %v364 = vmax.f32 %v332, 0.0
    %v365 = vmax.f32 %v333, 0.0
    %v366 = vmax.f32 %v334, 0.0
    %v367 = vmax.f32 %v335, 0.0
    %v368 = vmax.f32 %v336, 0.0
    %v369 = vmax.f32 %v337, 0.0
    %v370 = vmax.f32 %v338, 0.0
    %v371 = vmax.f32 %v339, 0.0
    %v372 = vmax.f32 %v340, 0.0
    %v373 = vmax.f32 %v341, 0.0
    %v374 = vmax.f32 %v342, 0.0
    %v375 = vmax.f32 %v343, 0.0
    %v376 = vmax.f32 %v344, 0.0
    %v377 = vmax.f32 %v345, 0.0
    %v378 = vmax.f32 %v346, 0.0
    %v379 = vmax.f32 %v347, 0.0
    %381 = vset.pattern.permute.xlu0 0
    %382 = vperm.xlu0 %381, %v212
    %v383 = vpop.permute.xlu0 %382
    %386 = vset.pattern.permute.xlu0 0
    %387 = vperm.xlu0 %386, %v213
    %v388 = vpop.permute.xlu0 %387
    %391 = vset.pattern.permute.xlu0 0
    %392 = vperm.xlu0 %391, %v214
    %v393 = vpop.permute.xlu0 %392
    %396 = vset.pattern.permute.xlu0 0
    %397 = vperm.xlu0 %396, %v215
    %v398 = vpop.permute.xlu0 %397
    %401 = vset.pattern.permute.xlu0 0
    %402 = vperm.xlu0 %401, %v216
    %v403 = vpop.permute.xlu0 %402
    %406 = vset.pattern.permute.xlu0 0
    %407 = vperm.xlu0 %406, %v217
    %v408 = vpop.permute.xlu0 %407
    %411 = vset.pattern.permute.xlu0 0
    %412 = vperm.xlu0 %411, %v218
    %v413 = vpop.permute.xlu0 %412
    %416 = vset.pattern.permute.xlu0 0
    %417 = vperm.xlu0 %416, %v219
    %v418 = vpop.permute.xlu0 %417
    %421 = vset.pattern.permute.xlu0 0
    %422 = vperm.xlu0 %421, %v220
    %v423 = vpop.permute.xlu0 %422
    %426 = vset.pattern.permute.xlu0 0
    %427 = vperm.xlu0 %426, %v221
    %v428 = vpop.permute.xlu0 %427
    %431 = vset.pattern.permute.xlu0 0
    %432 = vperm.xlu0 %431, %v222
    %v433 = vpop.permute.xlu0 %432
    %436 = vset.pattern.permute.xlu0 0
    %437 = vperm.xlu0 %436, %v223
    %v438 = vpop.permute.xlu0 %437
    %441 = vset.pattern.permute.xlu0 0
    %442 = vperm.xlu0 %441, %v224
    %v443 = vpop.permute.xlu0 %442
    %446 = vset.pattern.permute.xlu0 0
    %447 = vperm.xlu0 %446, %v225
    %v448 = vpop.permute.xlu0 %447
    %451 = vset.pattern.permute.xlu0 0
    %452 = vperm.xlu0 %451, %v226
    %v453 = vpop.permute.xlu0 %452
    %456 = vset.pattern.permute.xlu0 0
    %457 = vperm.xlu0 %456, %v227
    %v458 = vpop.permute.xlu0 %457
    %v460 = vadd.f32 %v383, %v311
    %v461 = vadd.f32 %v383, %v315
    %v462 = vadd.f32 %v388, %v311
    %v463 = vadd.f32 %v388, %v315
    %v464 = vadd.f32 %v393, %v311
    %v465 = vadd.f32 %v393, %v315
    %v466 = vadd.f32 %v398, %v311
    %v467 = vadd.f32 %v398, %v315
    %v468 = vadd.f32 %v403, %v311
    %v469 = vadd.f32 %v403, %v315
    %v470 = vadd.f32 %v408, %v311
    %v471 = vadd.f32 %v408, %v315
    %v472 = vadd.f32 %v413, %v311
    %v473 = vadd.f32 %v413, %v315
    %v474 = vadd.f32 %v418, %v311
    %v475 = vadd.f32 %v418, %v315
    %v476 = vadd.f32 %v423, %v311
    %v477 = vadd.f32 %v423, %v315
    %v478 = vadd.f32 %v428, %v311
    %v479 = vadd.f32 %v428, %v315
    %v480 = vadd.f32 %v433, %v311
    %v481 = vadd.f32 %v433, %v315
    %v482 = vadd.f32 %v438, %v311
    %v483 = vadd.f32 %v438, %v315
    %v484 = vadd.f32 %v443, %v311
    %v485 = vadd.f32 %v443, %v315
    %v486 = vadd.f32 %v448, %v311
    %v487 = vadd.f32 %v448, %v315
    %v488 = vadd.f32 %v453, %v311
    %v489 = vadd.f32 %v453, %v315
    %v490 = vadd.f32 %v458, %v311
    %v491 = vadd.f32 %v458, %v315
    %v492 = vmax.f32 %v460, 0.0
    %v493 = vmax.f32 %v461, 0.0
    %v494 = vmax.f32 %v462, 0.0
    %v495 = vmax.f32 %v463, 0.0
    %v496 = vmax.f32 %v464, 0.0
    %v497 = vmax.f32 %v465, 0.0
    %v498 = vmax.f32 %v466, 0.0
    %v499 = vmax.f32 %v467, 0.0
    %v500 = vmax.f32 %v468, 0.0
    %v501 = vmax.f32 %v469, 0.0
    %v502 = vmax.f32 %v470, 0.0
    %v503 = vmax.f32 %v471, 0.0
    %v504 = vmax.f32 %v472, 0.0
    %v505 = vmax.f32 %v473, 0.0
    %v506 = vmax.f32 %v474, 0.0
    %v507 = vmax.f32 %v475, 0.0
    %v508 = vmax.f32 %v476, 0.0
    %v509 = vmax.f32 %v477, 0.0
    %v510 = vmax.f32 %v478, 0.0
    %v511 = vmax.f32 %v479, 0.0
    %v512 = vmax.f32 %v480, 0.0
    %v513 = vmax.f32 %v481, 0.0
    %v514 = vmax.f32 %v482, 0.0
    %v515 = vmax.f32 %v483, 0.0
    %v516 = vmax.f32 %v484, 0.0
    %v517 = vmax.f32 %v485, 0.0
    %v518 = vmax.f32 %v486, 0.0
    %v519 = vmax.f32 %v487, 0.0
    %v520 = vmax.f32 %v488, 0.0
    %v521 = vmax.f32 %v489, 0.0
    %v522 = vmax.f32 %v490, 0.0
    %v523 = vmax.f32 %v491, 0.0
    %524 = vmatprep.subr.mxu0 %v493
    %525 = vmatpush1.msra.mxu0 %v492
    %526 = vmatprep.subr.mxu0 %v495
    %527 = vmatpush1.msra.mxu0 %v494
    %528 = vmatprep.subr.mxu0 %v497
    %529 = vmatpush1.msra.mxu0 %v496
    %530 = vmatprep.subr.mxu0 %v499
    %531 = vmatpush1.msra.mxu0 %v498
    %532 = vmatprep.subr.mxu0 %v501
    %533 = vmatpush1.msra.mxu0 %v500
    %534 = vmatprep.subr.mxu0 %v503
    %535 = vmatpush1.msra.mxu0 %v502
    %536 = vmatprep.subr.mxu0 %v505
    %537 = vmatpush1.msra.mxu0 %v504
    %538 = vmatprep.subr.mxu0 %v507
    %539 = vmatpush1.msra.mxu0 %v506
    %540 = vmatprep.subr.mxu0 %v509
    %541 = vmatpush1.msra.mxu0 %v508
    %542 = vmatprep.subr.mxu0 %v511
    %543 = vmatpush1.msra.mxu0 %v510
    %544 = vmatprep.subr.mxu0 %v513
    %545 = vmatpush1.msra.mxu0 %v512
    %546 = vmatprep.subr.mxu0 %v515
    %547 = vmatpush1.msra.mxu0 %v514
    %548 = vmatprep.subr.mxu0 %v517
    %549 = vmatpush1.msra.mxu0 %v516
    %550 = vmatprep.subr.mxu0 %v519
    %551 = vmatpush1.msra.mxu0 %v518
    %552 = vmatprep.subr.mxu0 %v521
    %553 = vmatpush1.msra.mxu0 %v520
    %554 = vmatprep.subr.mxu0 %v523
    %555 = vmatpush1.msra.mxu0 %v522
    %556 = vmatprep.subr.mxu0 0.0
    %557 = vmatpush1.msra.mxu0 0.0
    %558 = vmatprep.subr.mxu0 0.0
    %559 = vmatpush1.msra.mxu0 0.0
    %560 = vmatprep.subr.mxu0 0.0
    %561 = vmatpush1.msra.mxu0 0.0
    %562 = vmatprep.subr.mxu0 0.0
    %563 = vmatpush1.msra.mxu0 0.0
    %564 = vmatprep.subr.mxu0 0.0
    %565 = vmatpush1.msra.mxu0 0.0
    %566 = vmatprep.subr.mxu0 0.0
    %567 = vmatpush1.msra.mxu0 0.0
    %568 = vmatprep.subr.mxu0 0.0
    %569 = vmatpush1.msra.mxu0 0.0
    %570 = vmatprep.subr.mxu0 0.0
    %571 = vmatpush1.msra.mxu0 0.0
    %572 = vmatprep.subr.mxu0 0.0
    %573 = vmatpush1.msra.mxu0 0.0
    %574 = vmatprep.subr.mxu0 0.0
    %575 = vmatpush1.msra.mxu0 0.0
    %576 = vmatprep.subr.mxu0 0.0
    %577 = vmatpush1.msra.mxu0 0.0
    %578 = vmatprep.subr.mxu0 0.0
    %579 = vmatpush1.msra.mxu0 0.0
    %580 = vmatprep.subr.mxu0 0.0
    %581 = vmatpush1.msra.mxu0 0.0
    %582 = vmatprep.subr.mxu0 0.0
    %583 = vmatpush1.msra.mxu0 0.0
    %584 = vmatprep.subr.mxu0 0.0
    %585 = vmatpush1.msra.mxu0 0.0
    %586 = vmatprep.subr.mxu0 0.0
    %587 = vmatpush1.msra.mxu0 0.0
    %588 = vmatprep.mubr.f32.mxu0 0.0
    %589 = vmatmul.mubr.f32.gmra.mrb[0].mxu0 %v157
    %v590 = vpop.f32.mrb[0].mxu0
    %v591 = vadd.f32 0.0, %v590
    %v592 = vpop.f32.mrb[0].mxu0
    %v593 = vadd.f32 0.0, %v592
    %594 = vdwg.mxu0
    %595 = vmatprep.subr.mxu0 %v349
    %596 = vmatpush1.msra.mxu0 %v348
    %597 = vmatprep.subr.mxu0 %v351
    %598 = vmatpush1.msra.mxu0 %v350
    %599 = vmatprep.subr.mxu0 %v353
    %600 = vmatpush1.msra.mxu0 %v352
    %601 = vmatprep.subr.mxu0 %v355
    %602 = vmatpush1.msra.mxu0 %v354
    %603 = vmatprep.subr.mxu0 %v357
    %604 = vmatpush1.msra.mxu0 %v356
    %605 = vmatprep.subr.mxu0 %v359
    %606 = vmatpush1.msra.mxu0 %v358
    %607 = vmatprep.subr.mxu0 %v361
    %608 = vmatpush1.msra.mxu0 %v360
    %609 = vmatprep.subr.mxu0 %v363
    %610 = vmatpush1.msra.mxu0 %v362
    %611 = vmatprep.subr.mxu0 %v365
    %612 = vmatpush1.msra.mxu0 %v364
    %613 = vmatprep.subr.mxu0 %v367
    %614 = vmatpush1.msra.mxu0 %v366
    %615 = vmatprep.subr.mxu0 %v369
    %616 = vmatpush1.msra.mxu0 %v368
    %617 = vmatprep.subr.mxu0 %v371
    %618 = vmatpush1.msra.mxu0 %v370
    %619 = vmatprep.subr.mxu0 %v373
    %620 = vmatpush1.msra.mxu0 %v372
    %621 = vmatprep.subr.mxu0 %v375
    %622 = vmatpush1.msra.mxu0 %v374
    %623 = vmatprep.subr.mxu0 %v377
    %624 = vmatpush1.msra.mxu0 %v376
    %625 = vmatprep.subr.mxu0 %v379
    %626 = vmatpush1.msra.mxu0 %v378
    %627 = vmatprep.subr.mxu0 0.0
    %628 = vmatpush1.msra.mxu0 0.0
    %629 = vmatprep.subr.mxu0 0.0
    %630 = vmatpush1.msra.mxu0 0.0
    %631 = vmatprep.subr.mxu0 0.0
    %632 = vmatpush1.msra.mxu0 0.0
    %633 = vmatprep.subr.mxu0 0.0
    %634 = vmatpush1.msra.mxu0 0.0
    %635 = vmatprep.subr.mxu0 0.0
    %636 = vmatpush1.msra.mxu0 0.0
    %637 = vmatprep.subr.mxu0 0.0
    %638 = vmatpush1.msra.mxu0 0.0
    %639 = vmatprep.subr.mxu0 0.0
    %640 = vmatpush1.msra.mxu0 0.0
    %641 = vmatprep.subr.mxu0 0.0
    %642 = vmatpush1.msra.mxu0 0.0
    %643 = vmatprep.subr.mxu0 0.0
    %644 = vmatpush1.msra.mxu0 0.0
    %645 = vmatprep.subr.mxu0 0.0
    %646 = vmatpush1.msra.mxu0 0.0
    %647 = vmatprep.subr.mxu0 0.0
    %648 = vmatpush1.msra.mxu0 0.0
    %649 = vmatprep.subr.mxu0 0.0
    %650 = vmatpush1.msra.mxu0 0.0
    %651 = vmatprep.subr.mxu0 0.0
    %652 = vmatpush1.msra.mxu0 0.0
    %653 = vmatprep.subr.mxu0 0.0
    %654 = vmatpush1.msra.mxu0 0.0
    %655 = vmatprep.subr.mxu0 0.0
    %656 = vmatpush1.msra.mxu0 0.0
    %657 = vmatprep.subr.mxu0 0.0
    %658 = vmatpush1.msra.mxu0 0.0
    %659 = vmatprep.mubr.f32.mxu0 0.0
    %660 = vmatmul.mubr.f32.gmra.mrb[0].mxu0 %v156
    %v661 = vpop.f32.mrb[0].mxu0
    %v662 = vadd.f32 %v591, %v661
    %v663 = vpop.f32.mrb[0].mxu0
    %v664 = vadd.f32 %v593, %v663
    %665 = vdwg.mxu0
    %667 = vset.pattern.permute.xlu0 0
    %668 = vperm.xlu0 %667, %v38
    %v669 = vpop.permute.xlu0 %668
    %v671 = vadd.f32 %v662, %v669
    %v672 = vadd.f32 %v664, %v669
    %v674 = vadd.f32 %v671, %v39
    %v675 = vadd.f32 %v672, %v46
    %v678 = vcombine.low %v674, %v675
    %680 = vst [vmem:[#allocation5] sm:$0xff] %v678
    %s681 = scalar_lea.vmem [#allocation2], 8
    %v682 = vld [vmem:[%s681] sm:$0xff]
    %v684 = vcombine.high %v682, %v682
    %v685 = vsel %vm51, %v682, 0
    %v687 = vsel %vm51, %v684, 0
    %689 = vmatprep.subr.mxu0 %v687
    %690 = vmatpush1.msra.mxu0 %v685
    %691 = vmatprep.subr.mxu0 0.0
    %692 = vmatpush1.msra.mxu0 0.0
    %693 = vmatprep.subr.mxu0 0.0
    %694 = vmatpush1.msra.mxu0 0.0
    %695 = vmatprep.subr.mxu0 0.0
    %696 = vmatpush1.msra.mxu0 0.0
    %697 = vmatprep.subr.mxu0 0.0
    %698 = vmatpush1.msra.mxu0 0.0
    %699 = vmatprep.subr.mxu0 0.0
    %700 = vmatpush1.msra.mxu0 0.0
    %701 = vmatprep.subr.mxu0 0.0
    %702 = vmatpush1.msra.mxu0 0.0
    %703 = vmatprep.subr.mxu0 0.0
    %704 = vmatpush1.msra.mxu0 0.0
    %705 = vmatprep.subr.mxu0 0.0
    %706 = vmatpush1.msra.mxu0 0.0
    %707 = vmatprep.subr.mxu0 0.0
    %708 = vmatpush1.msra.mxu0 0.0
    %709 = vmatprep.subr.mxu0 0.0
    %710 = vmatpush1.msra.mxu0 0.0
    %711 = vmatprep.subr.mxu0 0.0
    %712 = vmatpush1.msra.mxu0 0.0
    %713 = vmatprep.subr.mxu0 0.0
    %714 = vmatpush1.msra.mxu0 0.0
    %715 = vmatprep.subr.mxu0 0.0
    %716 = vmatpush1.msra.mxu0 0.0
    %717 = vmatprep.subr.mxu0 0.0
    %718 = vmatpush1.msra.mxu0 0.0
    %719 = vmatprep.subr.mxu0 0.0
    %720 = vmatpush1.msra.mxu0 0.0
    %721 = vmatprep.subr.mxu0 0.0
    %722 = vmatpush1.msra.mxu0 0.0
    %723 = vmatprep.subr.mxu0 0.0
    %724 = vmatpush1.msra.mxu0 0.0
    %725 = vmatprep.subr.mxu0 0.0
    %726 = vmatpush1.msra.mxu0 0.0
    %727 = vmatprep.subr.mxu0 0.0
    %728 = vmatpush1.msra.mxu0 0.0
    %729 = vmatprep.subr.mxu0 0.0
    %730 = vmatpush1.msra.mxu0 0.0
    %731 = vmatprep.subr.mxu0 0.0
    %732 = vmatpush1.msra.mxu0 0.0
    %733 = vmatprep.subr.mxu0 0.0
    %734 = vmatpush1.msra.mxu0 0.0
    %735 = vmatprep.subr.mxu0 0.0
    %736 = vmatpush1.msra.mxu0 0.0
    %737 = vmatprep.subr.mxu0 0.0
    %738 = vmatpush1.msra.mxu0 0.0
    %739 = vmatprep.subr.mxu0 0.0
    %740 = vmatpush1.msra.mxu0 0.0
    %741 = vmatprep.subr.mxu0 0.0
    %742 = vmatpush1.msra.mxu0 0.0
    %743 = vmatprep.subr.mxu0 0.0
    %744 = vmatpush1.msra.mxu0 0.0
    %745 = vmatprep.subr.mxu0 0.0
    %746 = vmatpush1.msra.mxu0 0.0
    %747 = vmatprep.subr.mxu0 0.0
    %748 = vmatpush1.msra.mxu0 0.0
    %749 = vmatprep.subr.mxu0 0.0
    %750 = vmatpush1.msra.mxu0 0.0
    %751 = vmatprep.subr.mxu0 0.0
    %752 = vmatpush1.msra.mxu0 0.0
    %753 = vmatprep.mubr.f32.mxu0 0.0
    %754 = vmatmul.mubr.f32.gmra.mrb[0].mxu0 %v49
    %v755 = vpop.f32.mrb[0].mxu0
    %v756 = vadd.f32 %v43, %v755
    %v757 = vpop.f32.mrb[0].mxu0
    %v758 = vadd.f32 %v43, %v757
    %759 = vdwg.mxu0
    %v760 = vlaneseq
    %v761 = vshrl.u32 %v760, 7
    %v762 = vsub.s32 0, %v761
    %v763 = vrot.slane %v756, %v762
    %v764 = vlaneseq
    %v765 = vshrl.u32 %v764, 7
    %v766 = vsub.s32 0, %v765
    %v767 = vrot.slane %v758, %v766
    %v768 = vmul.f32 %v130, %v763
    %v769 = vmul.f32 %v130, %v767
    %v770 = vlaneseq
    %v771 = vshrl.u32 %v770, 7
    %v772 = vsub.s32 1, %v771
    %v773 = vrot.slane %v756, %v772
    %v774 = vlaneseq
    %v775 = vshrl.u32 %v774, 7
    %v776 = vsub.s32 1, %v775
    %v777 = vrot.slane %v758, %v776
    %v778 = vmul.f32 %v144, %v773
    %v779 = vmul.f32 %v144, %v777
    %v780 = vadd.f32 %v768, %v778
    %v781 = vadd.f32 %v769, %v779
    %v784 = vrot.slane %v756, 3
    %v785 = vrot.slane %v758, 3
    %788 = vxpose.xlu0.b32.start [1/16] %v784, 128
    %789 = vxpose.xlu0.b32.cont [2/16] 0.0, 128
    %790 = vxpose.xlu0.b32.cont [3/16] 0.0, 128
    %791 = vxpose.xlu0.b32.cont [4/16] 0.0, 128
    %792 = vxpose.xlu0.b32.cont [5/16] 0.0, 128
    %793 = vxpose.xlu0.b32.cont [6/16] 0.0, 128
    %794 = vxpose.xlu0.b32.cont [7/16] 0.0, 128
    %795 = vxpose.xlu0.b32.cont [8/16] 0.0, 128
    %796 = vxpose.xlu0.b32.cont [9/16] 0.0, 128
    %797 = vxpose.xlu0.b32.cont [10/16] 0.0, 128
    %798 = vxpose.xlu0.b32.cont [11/16] 0.0, 128
    %799 = vxpose.xlu0.b32.cont [12/16] 0.0, 128
    %800 = vxpose.xlu0.b32.cont [13/16] 0.0, 128
    %801 = vxpose.xlu0.b32.cont [14/16] 0.0, 128
    %802 = vxpose.xlu0.b32.cont [15/16] 0.0, 128
    %803 = vxpose.xlu0.b32.end [16/16] 0.0, 128
    %v804 = vpop.trf.xlu0
    %v805 = vpop.trf.xlu0
    %v806 = vpop.trf.xlu0
    %v807 = vpop.trf.xlu0
    %v808 = vpop.trf.xlu0
    %v809 = vpop.trf.xlu0
    %v810 = vpop.trf.xlu0
    %v811 = vpop.trf.xlu0
    %v812 = vpop.trf.xlu0
    %v813 = vpop.trf.xlu0
    %v814 = vpop.trf.xlu0
    %v815 = vpop.trf.xlu0
    %v816 = vpop.trf.xlu0
    %v817 = vpop.trf.xlu0
    %v818 = vpop.trf.xlu0
    %v819 = vpop.trf.xlu0
    %820 = vxpose.xlu0.b32.start [1/16] %v785, 128
    %821 = vxpose.xlu0.b32.cont [2/16] 0.0, 128
    %822 = vxpose.xlu0.b32.cont [3/16] 0.0, 128
    %823 = vxpose.xlu0.b32.cont [4/16] 0.0, 128
    %824 = vxpose.xlu0.b32.cont [5/16] 0.0, 128
    %825 = vxpose.xlu0.b32.cont [6/16] 0.0, 128
    %826 = vxpose.xlu0.b32.cont [7/16] 0.0, 128
    %827 = vxpose.xlu0.b32.cont [8/16] 0.0, 128
    %828 = vxpose.xlu0.b32.cont [9/16] 0.0, 128
    %829 = vxpose.xlu0.b32.cont [10/16] 0.0, 128
    %830 = vxpose.xlu0.b32.cont [11/16] 0.0, 128
    %831 = vxpose.xlu0.b32.cont [12/16] 0.0, 128
    %832 = vxpose.xlu0.b32.cont [13/16] 0.0, 128
    %833 = vxpose.xlu0.b32.cont [14/16] 0.0, 128
    %834 = vxpose.xlu0.b32.cont [15/16] 0.0, 128
    %835 = vxpose.xlu0.b32.end [16/16] 0.0, 128
    %v836 = vpop.trf.xlu0
    %v837 = vpop.trf.xlu0
    %v838 = vpop.trf.xlu0
    %v839 = vpop.trf.xlu0
    %v840 = vpop.trf.xlu0
    %v841 = vpop.trf.xlu0
    %v842 = vpop.trf.xlu0
    %v843 = vpop.trf.xlu0
    %v844 = vpop.trf.xlu0
    %v845 = vpop.trf.xlu0
    %v846 = vpop.trf.xlu0
    %v847 = vpop.trf.xlu0
    %v848 = vpop.trf.xlu0
    %v849 = vpop.trf.xlu0
    %v850 = vpop.trf.xlu0
    %v851 = vpop.trf.xlu0
    %853 = vset.pattern.permute.xlu0 0
    %854 = vperm.xlu0 %853, %v804
    %v855 = vpop.permute.xlu0 %854
    %858 = vset.pattern.permute.xlu0 0
    %859 = vperm.xlu0 %858, %v805
    %v860 = vpop.permute.xlu0 %859
    %863 = vset.pattern.permute.xlu0 0
    %864 = vperm.xlu0 %863, %v806
    %v865 = vpop.permute.xlu0 %864
    %868 = vset.pattern.permute.xlu0 0
    %869 = vperm.xlu0 %868, %v807
    %v870 = vpop.permute.xlu0 %869
    %873 = vset.pattern.permute.xlu0 0
    %874 = vperm.xlu0 %873, %v808
    %v875 = vpop.permute.xlu0 %874
    %878 = vset.pattern.permute.xlu0 0
    %879 = vperm.xlu0 %878, %v809
    %v880 = vpop.permute.xlu0 %879
    %883 = vset.pattern.permute.xlu0 0
    %884 = vperm.xlu0 %883, %v810
    %v885 = vpop.permute.xlu0 %884
    %888 = vset.pattern.permute.xlu0 0
    %889 = vperm.xlu0 %888, %v811
    %v890 = vpop.permute.xlu0 %889
    %893 = vset.pattern.permute.xlu0 0
    %894 = vperm.xlu0 %893, %v812
    %v895 = vpop.permute.xlu0 %894
    %898 = vset.pattern.permute.xlu0 0
    %899 = vperm.xlu0 %898, %v813
    %v900 = vpop.permute.xlu0 %899
    %903 = vset.pattern.permute.xlu0 0
    %904 = vperm.xlu0 %903, %v814
    %v905 = vpop.permute.xlu0 %904
    %908 = vset.pattern.permute.xlu0 0
    %909 = vperm.xlu0 %908, %v815
    %v910 = vpop.permute.xlu0 %909
    %913 = vset.pattern.permute.xlu0 0
    %914 = vperm.xlu0 %913, %v816
    %v915 = vpop.permute.xlu0 %914
    %918 = vset.pattern.permute.xlu0 0
    %919 = vperm.xlu0 %918, %v817
    %v920 = vpop.permute.xlu0 %919
    %923 = vset.pattern.permute.xlu0 0
    %924 = vperm.xlu0 %923, %v818
    %v925 = vpop.permute.xlu0 %924
    %928 = vset.pattern.permute.xlu0 0
    %929 = vperm.xlu0 %928, %v819
    %v930 = vpop.permute.xlu0 %929
    %v932 = vlaneseq
    %v933 = vshrl.u32 %v932, 7
    %v934 = vsub.s32 2, %v933
    %v935 = vrot.slane %v756, %v934
    %v936 = vlaneseq
    %v937 = vshrl.u32 %v936, 7
    %v938 = vsub.s32 2, %v937
    %v939 = vrot.slane %v758, %v938
    %v940 = vadd.f32 %v855, %v935
    %v941 = vadd.f32 %v855, %v939
    %v942 = vadd.f32 %v860, %v935
    %v943 = vadd.f32 %v860, %v939
    %v944 = vadd.f32 %v865, %v935
    %v945 = vadd.f32 %v865, %v939
    %v946 = vadd.f32 %v870, %v935
    %v947 = vadd.f32 %v870, %v939
    %v948 = vadd.f32 %v875, %v935
    %v949 = vadd.f32 %v875, %v939
    %v950 = vadd.f32 %v880, %v935
    %v951 = vadd.f32 %v880, %v939
    %v952 = vadd.f32 %v885, %v935
    %v953 = vadd.f32 %v885, %v939
    %v954 = vadd.f32 %v890, %v935
    %v955 = vadd.f32 %v890, %v939
    %v956 = vadd.f32 %v895, %v935
    %v957 = vadd.f32 %v895, %v939
    %v958 = vadd.f32 %v900, %v935
    %v959 = vadd.f32 %v900, %v939
    %v960 = vadd.f32 %v905, %v935
    %v961 = vadd.f32 %v905, %v939
    %v962 = vadd.f32 %v910, %v935
    %v963 = vadd.f32 %v910, %v939
    %v964 = vadd.f32 %v915, %v935
    %v965 = vadd.f32 %v915, %v939
    %v966 = vadd.f32 %v920, %v935
    %v967 = vadd.f32 %v920, %v939
    %v968 = vadd.f32 %v925, %v935
    %v969 = vadd.f32 %v925, %v939
    %v970 = vadd.f32 %v930, %v935
    %v971 = vadd.f32 %v930, %v939
    %v972 = vmax.f32 %v940, 0.0
    %v973 = vmax.f32 %v941, 0.0
    %v974 = vmax.f32 %v942, 0.0
    %v975 = vmax.f32 %v943, 0.0
    %v976 = vmax.f32 %v944, 0.0
    %v977 = vmax.f32 %v945, 0.0
    %v978 = vmax.f32 %v946, 0.0
    %v979 = vmax.f32 %v947, 0.0
    %v980 = vmax.f32 %v948, 0.0
    %v981 = vmax.f32 %v949, 0.0
    %v982 = vmax.f32 %v950, 0.0
    %v983 = vmax.f32 %v951, 0.0
    %v984 = vmax.f32 %v952, 0.0
    %v985 = vmax.f32 %v953, 0.0
    %v986 = vmax.f32 %v954, 0.0
    %v987 = vmax.f32 %v955, 0.0
    %v988 = vmax.f32 %v956, 0.0
    %v989 = vmax.f32 %v957, 0.0
    %v990 = vmax.f32 %v958, 0.0
    %v991 = vmax.f32 %v959, 0.0
    %v992 = vmax.f32 %v960, 0.0
    %v993 = vmax.f32 %v961, 0.0
    %v994 = vmax.f32 %v962, 0.0
    %v995 = vmax.f32 %v963, 0.0
    %v996 = vmax.f32 %v964, 0.0
    %v997 = vmax.f32 %v965, 0.0
    %v998 = vmax.f32 %v966, 0.0
    %v999 = vmax.f32 %v967, 0.0
    %v1000 = vmax.f32 %v968, 0.0
    %v1001 = vmax.f32 %v969, 0.0
    %v1002 = vmax.f32 %v970, 0.0
    %v1003 = vmax.f32 %v971, 0.0
    %1005 = vset.pattern.permute.xlu0 0
    %1006 = vperm.xlu0 %1005, %v836
    %v1007 = vpop.permute.xlu0 %1006
    %1010 = vset.pattern.permute.xlu0 0
    %1011 = vperm.xlu0 %1010, %v837
    %v1012 = vpop.permute.xlu0 %1011
    %1015 = vset.pattern.permute.xlu0 0
    %1016 = vperm.xlu0 %1015, %v838
    %v1017 = vpop.permute.xlu0 %1016
    %1020 = vset.pattern.permute.xlu0 0
    %1021 = vperm.xlu0 %1020, %v839
    %v1022 = vpop.permute.xlu0 %1021
    %1025 = vset.pattern.permute.xlu0 0
    %1026 = vperm.xlu0 %1025, %v840
    %v1027 = vpop.permute.xlu0 %1026
    %1030 = vset.pattern.permute.xlu0 0
    %1031 = vperm.xlu0 %1030, %v841
    %v1032 = vpop.permute.xlu0 %1031
    %1035 = vset.pattern.permute.xlu0 0
    %1036 = vperm.xlu0 %1035, %v842
    %v1037 = vpop.permute.xlu0 %1036
    %1040 = vset.pattern.permute.xlu0 0
    %1041 = vperm.xlu0 %1040, %v843
    %v1042 = vpop.permute.xlu0 %1041
    %1045 = vset.pattern.permute.xlu0 0
    %1046 = vperm.xlu0 %1045, %v844
    %v1047 = vpop.permute.xlu0 %1046
    %1050 = vset.pattern.permute.xlu0 0
    %1051 = vperm.xlu0 %1050, %v845
    %v1052 = vpop.permute.xlu0 %1051
    %1055 = vset.pattern.permute.xlu0 0
    %1056 = vperm.xlu0 %1055, %v846
    %v1057 = vpop.permute.xlu0 %1056
    %1060 = vset.pattern.permute.xlu0 0
    %1061 = vperm.xlu0 %1060, %v847
    %v1062 = vpop.permute.xlu0 %1061
    %1065 = vset.pattern.permute.xlu0 0
    %1066 = vperm.xlu0 %1065, %v848
    %v1067 = vpop.permute.xlu0 %1066
    %1070 = vset.pattern.permute.xlu0 0
    %1071 = vperm.xlu0 %1070, %v849
    %v1072 = vpop.permute.xlu0 %1071
    %1075 = vset.pattern.permute.xlu0 0
    %1076 = vperm.xlu0 %1075, %v850
    %v1077 = vpop.permute.xlu0 %1076
    %1080 = vset.pattern.permute.xlu0 0
    %1081 = vperm.xlu0 %1080, %v851
    %v1082 = vpop.permute.xlu0 %1081
    %v1084 = vadd.f32 %v1007, %v935
    %v1085 = vadd.f32 %v1007, %v939
    %v1086 = vadd.f32 %v1012, %v935
    %v1087 = vadd.f32 %v1012, %v939
    %v1088 = vadd.f32 %v1017, %v935
    %v1089 = vadd.f32 %v1017, %v939
    %v1090 = vadd.f32 %v1022, %v935
    %v1091 = vadd.f32 %v1022, %v939
    %v1092 = vadd.f32 %v1027, %v935
    %v1093 = vadd.f32 %v1027, %v939
    %v1094 = vadd.f32 %v1032, %v935
    %v1095 = vadd.f32 %v1032, %v939
    %v1096 = vadd.f32 %v1037, %v935
    %v1097 = vadd.f32 %v1037, %v939
    %v1098 = vadd.f32 %v1042, %v935
    %v1099 = vadd.f32 %v1042, %v939
    %v1100 = vadd.f32 %v1047, %v935
    %v1101 = vadd.f32 %v1047, %v939
    %v1102 = vadd.f32 %v1052, %v935
    %v1103 = vadd.f32 %v1052, %v939
    %v1104 = vadd.f32 %v1057, %v935
    %v1105 = vadd.f32 %v1057, %v939
    %v1106 = vadd.f32 %v1062, %v935
    %v1107 = vadd.f32 %v1062, %v939
    %v1108 = vadd.f32 %v1067, %v935
    %v1109 = vadd.f32 %v1067, %v939
    %v1110 = vadd.f32 %v1072, %v935
    %v1111 = vadd.f32 %v1072, %v939
    %v1112 = vadd.f32 %v1077, %v935
    %v1113 = vadd.f32 %v1077, %v939
    %v1114 = vadd.f32 %v1082, %v935
    %v1115 = vadd.f32 %v1082, %v939
    %v1116 = vmax.f32 %v1084, 0.0
    %v1117 = vmax.f32 %v1085, 0.0
    %v1118 = vmax.f32 %v1086, 0.0
    %v1119 = vmax.f32 %v1087, 0.0
    %v1120 = vmax.f32 %v1088, 0.0
    %v1121 = vmax.f32 %v1089, 0.0
    %v1122 = vmax.f32 %v1090, 0.0
    %v1123 = vmax.f32 %v1091, 0.0
    %v1124 = vmax.f32 %v1092, 0.0
    %v1125 = vmax.f32 %v1093, 0.0
    %v1126 = vmax.f32 %v1094, 0.0
    %v1127 = vmax.f32 %v1095, 0.0
    %v1128 = vmax.f32 %v1096, 0.0
    %v1129 = vmax.f32 %v1097, 0.0
    %v1130 = vmax.f32 %v1098, 0.0
    %v1131 = vmax.f32 %v1099, 0.0
    %v1132 = vmax.f32 %v1100, 0.0
    %v1133 = vmax.f32 %v1101, 0.0
    %v1134 = vmax.f32 %v1102, 0.0
    %v1135 = vmax.f32 %v1103, 0.0
    %v1136 = vmax.f32 %v1104, 0.0
    %v1137 = vmax.f32 %v1105, 0.0
    %v1138 = vmax.f32 %v1106, 0.0
    %v1139 = vmax.f32 %v1107, 0.0
    %v1140 = vmax.f32 %v1108, 0.0
    %v1141 = vmax.f32 %v1109, 0.0
    %v1142 = vmax.f32 %v1110, 0.0
    %v1143 = vmax.f32 %v1111, 0.0
    %v1144 = vmax.f32 %v1112, 0.0
    %v1145 = vmax.f32 %v1113, 0.0
    %v1146 = vmax.f32 %v1114, 0.0
    %v1147 = vmax.f32 %v1115, 0.0
    %1148 = vmatprep.subr.mxu0 %v1117
    %1149 = vmatpush1.msra.mxu0 %v1116
    %1150 = vmatprep.subr.mxu0 %v1119
    %1151 = vmatpush1.msra.mxu0 %v1118
    %1152 = vmatprep.subr.mxu0 %v1121
    %1153 = vmatpush1.msra.mxu0 %v1120
    %1154 = vmatprep.subr.mxu0 %v1123
    %1155 = vmatpush1.msra.mxu0 %v1122
    %1156 = vmatprep.subr.mxu0 %v1125
    %1157 = vmatpush1.msra.mxu0 %v1124
    %1158 = vmatprep.subr.mxu0 %v1127
    %1159 = vmatpush1.msra.mxu0 %v1126
    %1160 = vmatprep.subr.mxu0 %v1129
    %1161 = vmatpush1.msra.mxu0 %v1128
    %1162 = vmatprep.subr.mxu0 %v1131
    %1163 = vmatpush1.msra.mxu0 %v1130
    %1164 = vmatprep.subr.mxu0 %v1133
    %1165 = vmatpush1.msra.mxu0 %v1132
    %1166 = vmatprep.subr.mxu0 %v1135
    %1167 = vmatpush1.msra.mxu0 %v1134
    %1168 = vmatprep.subr.mxu0 %v1137
    %1169 = vmatpush1.msra.mxu0 %v1136
    %1170 = vmatprep.subr.mxu0 %v1139
    %1171 = vmatpush1.msra.mxu0 %v1138
    %1172 = vmatprep.subr.mxu0 %v1141
    %1173 = vmatpush1.msra.mxu0 %v1140
    %1174 = vmatprep.subr.mxu0 %v1143
    %1175 = vmatpush1.msra.mxu0 %v1142
    %1176 = vmatprep.subr.mxu0 %v1145
    %1177 = vmatpush1.msra.mxu0 %v1144
    %1178 = vmatprep.subr.mxu0 %v1147
    %1179 = vmatpush1.msra.mxu0 %v1146
    %1180 = vmatprep.subr.mxu0 0.0
    %1181 = vmatpush1.msra.mxu0 0.0
    %1182 = vmatprep.subr.mxu0 0.0
    %1183 = vmatpush1.msra.mxu0 0.0
    %1184 = vmatprep.subr.mxu0 0.0
    %1185 = vmatpush1.msra.mxu0 0.0
    %1186 = vmatprep.subr.mxu0 0.0
    %1187 = vmatpush1.msra.mxu0 0.0
    %1188 = vmatprep.subr.mxu0 0.0
    %1189 = vmatpush1.msra.mxu0 0.0
    %1190 = vmatprep.subr.mxu0 0.0
    %1191 = vmatpush1.msra.mxu0 0.0
    %1192 = vmatprep.subr.mxu0 0.0
    %1193 = vmatpush1.msra.mxu0 0.0
    %1194 = vmatprep.subr.mxu0 0.0
    %1195 = vmatpush1.msra.mxu0 0.0
    %1196 = vmatprep.subr.mxu0 0.0
    %1197 = vmatpush1.msra.mxu0 0.0
    %1198 = vmatprep.subr.mxu0 0.0
    %1199 = vmatpush1.msra.mxu0 0.0
    %1200 = vmatprep.subr.mxu0 0.0
    %1201 = vmatpush1.msra.mxu0 0.0
    %1202 = vmatprep.subr.mxu0 0.0
    %1203 = vmatpush1.msra.mxu0 0.0
    %1204 = vmatprep.subr.mxu0 0.0
    %1205 = vmatpush1.msra.mxu0 0.0
    %1206 = vmatprep.subr.mxu0 0.0
    %1207 = vmatpush1.msra.mxu0 0.0
    %1208 = vmatprep.subr.mxu0 0.0
    %1209 = vmatpush1.msra.mxu0 0.0
    %1210 = vmatprep.subr.mxu0 0.0
    %1211 = vmatpush1.msra.mxu0 0.0
    %1212 = vmatprep.mubr.f32.mxu0 0.0
    %1213 = vmatmul.mubr.f32.gmra.mrb[0].mxu0 %v781
    %v1214 = vpop.f32.mrb[0].mxu0
    %v1215 = vadd.f32 0.0, %v1214
    %v1216 = vpop.f32.mrb[0].mxu0
    %v1217 = vadd.f32 0.0, %v1216
    %1218 = vdwg.mxu0
    %1219 = vmatprep.subr.mxu0 %v973
    %1220 = vmatpush1.msra.mxu0 %v972
    %1221 = vmatprep.subr.mxu0 %v975
    %1222 = vmatpush1.msra.mxu0 %v974
    %1223 = vmatprep.subr.mxu0 %v977
    %1224 = vmatpush1.msra.mxu0 %v976
    %1225 = vmatprep.subr.mxu0 %v979
    %1226 = vmatpush1.msra.mxu0 %v978
    %1227 = vmatprep.subr.mxu0 %v981
    %1228 = vmatpush1.msra.mxu0 %v980
    %1229 = vmatprep.subr.mxu0 %v983
    %1230 = vmatpush1.msra.mxu0 %v982
    %1231 = vmatprep.subr.mxu0 %v985
    %1232 = vmatpush1.msra.mxu0 %v984
    %1233 = vmatprep.subr.mxu0 %v987
    %1234 = vmatpush1.msra.mxu0 %v986
    %1235 = vmatprep.subr.mxu0 %v989
    %1236 = vmatpush1.msra.mxu0 %v988
    %1237 = vmatprep.subr.mxu0 %v991
    %1238 = vmatpush1.msra.mxu0 %v990
    %1239 = vmatprep.subr.mxu0 %v993
    %1240 = vmatpush1.msra.mxu0 %v992
    %1241 = vmatprep.subr.mxu0 %v995
    %1242 = vmatpush1.msra.mxu0 %v994
    %1243 = vmatprep.subr.mxu0 %v997
    %1244 = vmatpush1.msra.mxu0 %v996
    %1245 = vmatprep.subr.mxu0 %v999
    %1246 = vmatpush1.msra.mxu0 %v998
    %1247 = vmatprep.subr.mxu0 %v1001
    %1248 = vmatpush1.msra.mxu0 %v1000
    %1249 = vmatprep.subr.mxu0 %v1003
    %1250 = vmatpush1.msra.mxu0 %v1002
    %1251 = vmatprep.subr.mxu0 0.0
    %1252 = vmatpush1.msra.mxu0 0.0
    %1253 = vmatprep.subr.mxu0 0.0
    %1254 = vmatpush1.msra.mxu0 0.0
    %1255 = vmatprep.subr.mxu0 0.0
    %1256 = vmatpush1.msra.mxu0 0.0
    %1257 = vmatprep.subr.mxu0 0.0
    %1258 = vmatpush1.msra.mxu0 0.0
    %1259 = vmatprep.subr.mxu0 0.0
    %1260 = vmatpush1.msra.mxu0 0.0
    %1261 = vmatprep.subr.mxu0 0.0
    %1262 = vmatpush1.msra.mxu0 0.0
    %1263 = vmatprep.subr.mxu0 0.0
    %1264 = vmatpush1.msra.mxu0 0.0
    %1265 = vmatprep.subr.mxu0 0.0
    %1266 = vmatpush1.msra.mxu0 0.0
    %1267 = vmatprep.subr.mxu0 0.0
    %1268 = vmatpush1.msra.mxu0 0.0
    %1269 = vmatprep.subr.mxu0 0.0
    %1270 = vmatpush1.msra.mxu0 0.0
    %1271 = vmatprep.subr.mxu0 0.0
    %1272 = vmatpush1.msra.mxu0 0.0
    %1273 = vmatprep.subr.mxu0 0.0
    %1274 = vmatpush1.msra.mxu0 0.0
    %1275 = vmatprep.subr.mxu0 0.0
    %1276 = vmatpush1.msra.mxu0 0.0
    %1277 = vmatprep.subr.mxu0 0.0
    %1278 = vmatpush1.msra.mxu0 0.0
    %1279 = vmatprep.subr.mxu0 0.0
    %1280 = vmatpush1.msra.mxu0 0.0
    %1281 = vmatprep.subr.mxu0 0.0
    %1282 = vmatpush1.msra.mxu0 0.0
    %1283 = vmatprep.mubr.f32.mxu0 0.0
    %1284 = vmatmul.mubr.f32.gmra.mrb[0].mxu0 %v780
    %v1285 = vpop.f32.mrb[0].mxu0
    %v1286 = vadd.f32 %v1215, %v1285
    %v1287 = vpop.f32.mrb[0].mxu0
    %v1288 = vadd.f32 %v1217, %v1287
    %1289 = vdwg.mxu0
    %v1290 = vadd.f32 %v1286, %v669
    %v1291 = vadd.f32 %v1288, %v669
    %v1293 = vadd.f32 %v1290, %v682
    %v1294 = vadd.f32 %v1291, %v684
    %v1297 = vcombine.low %v1293, %v1294
    %s1299 = scalar_lea.vmem [#allocation5], 8
    %1300 = vst [vmem:[%s1299] sm:$0xff] %v1297
    // Predicated region
    $region26: #{tpu_custom_call.1} parent=1 // pred_check
      _
    $region27: #{tpu_custom_call.1} parent=1 // pred_check_branch
      %1302 = sbr.rel (0) target = $region29
    $region28: #{tpu_custom_call.1} parent=1 // pred_region
      %s1304 = ssub.s32 256, 256
      %1305 = vsyncadd [#allocation4], %s1304
      %s1306 = sshll.u32 [#allocation5], 4
      %s1307 = int_to_ptr.vmem [resolvable:$true] %s1306
      %1312 = dma.vmem_to_hbm [thread:$0]  %s1307, 256, %s5, [#allocation4], 128, 128, 8
    $region29: #{tpu_custom_call.1} parent=1 // pred_fallthru
      _
    // Predicated region
    $region30: #{tpu_custom_call.1} parent=1 // pred_check
      _
    $region31: #{tpu_custom_call.1} parent=1 // pred_check_branch
      %1314 = sbr.rel (0) target = $region33
    $region32: #{tpu_custom_call.1} parent=1 // pred_region
      %1315 = dma.done [#allocation4], 256
    $region33: #{tpu_custom_call.1} parent=1 // pred_fallthru
      _
    %1316 = vsyncpa [#allocation3], 1
    %1317 = vsyncpa [#allocation4], 1

</llo_original>
